<compile_context>
chip_gen: v7x
topology: tpu7x:2x2x1
jax: 0.10.0
libtpu: 0.0.40
codegen_flags: <defaults>
</compile_context>

<pallas_src>
import functools

import jax
import jax.numpy as jnp
from jax import lax
from jax.experimental import pallas as pl
from jax.experimental.pallas import tpu as pltpu


def _round_up(x, m):
    return -(-x // m) * m


_NEG = float(jnp.finfo(jnp.float32).min)


def _lscnn_kernel(emb_ref, w_ref, lim_ref, b_ref, wfc_ref, bfc_ref, out_ref, max_ref, *,
                  tb, tc, num_chunks, kmax, e, kn3, use_im2col):
    """One grid step: TB batch rows -> (TB, CP) logits.

    emb_ref : (TB, LP, E)                     bf16  LP >= num_chunks*tc + kmax - 1, zero pad
    w_ref   : (kmax*E, 3K) or (kmax, E, 3K)   bf16  fused conv weights (taps zero-padded)
    lim_ref : (1, 3K)                         int32 per-channel valid-time limit (L - k + 1)
    b_ref   : (1, 3K)                         f32   fused conv bias (added after the max)
    wfc_ref : (3K, CP)                        bf16  FC weight, out channels padded to CP
    bfc_ref : (1, CP)                         f32
    out_ref : (TB, CP)                        f32
    max_ref : (TB, 3K)                        f32   running time-max scratch
    """
    limits = lim_ref[...]                                         # (1, 3K) int32

    def chunk_scores(base):
        # Fused Conv1d scores for time positions [base, base + tc): (TB, tc, 3K) f32.
        if use_im2col:
            # Fold the kmax taps into the contraction: one deep MXU matmul per chunk.
            taps = [emb_ref[:, base + j:base + j + tc, :] for j in range(kmax)]
            x = jnp.concatenate(taps, axis=-1).reshape(tb * tc, kmax * e)
            s = jnp.dot(x, w_ref[...], preferred_element_type=jnp.float32)
        else:
            s = None
            for j in range(kmax):
                xj = emb_ref[:, base + j:base + j + tc, :].reshape(tb * tc, e)
                pj = jnp.dot(xj, w_ref[j], preferred_element_type=jnp.float32)
                s = pj if s is None else s + pj
        return s.reshape(tb, tc, kn3)

    # Chunked time loop with a running max (never materializes the full (TB*L, 3K) acc).
    for c in range(num_chunks):                                    # static, small trip count
        base = c * tc
        s = chunk_scores(base)                                     # (TB, tc, 3K) f32
        t_idx = base + lax.broadcasted_iota(jnp.int32, (tc, kn3), 0)
        s = jnp.where((t_idx < limits)[None, :, :], s, _NEG)       # mask invalid positions
        cmax = jnp.max(s, axis=1)                                  # (TB, 3K)
        if c == 0:
            max_ref[...] = cmax
        else:
            max_ref[...] = jnp.maximum(max_ref[...], cmax)

    pooled = max_ref[...] + b_ref[...]                             # conv bias after the max
    # TODO(synk): dropout is identity (inference semantics).
    logits = jnp.dot(pooled.astype(jnp.bfloat16), wfc_ref[...],
                     preferred_element_type=jnp.float32) + bfc_ref[...]
    out_ref[...] = logits.astype(out_ref.dtype)                    # lane-dense (TB, CP) store


def lscnn_forward(emb, conv_ws, conv_bs, wfc, bfc, *, kernel_sizes=(3, 5, 7),
                  time_chunk=256, vmem_budget_bytes=24 << 20):
    """LSCNN forward (dynamic mode, eval dropout).

    emb     : (B, L, E) embedded tokens (any float dtype; cast to bf16 inside).
    conv_ws : list, conv_ws[i] of shape (k_i, E, K)  (PyTorch (K, E, k_i) re-laid-out)
    conv_bs : list, conv_bs[i] of shape (1, K)
    wfc     : (3K, C)  (PyTorch (C, 3K) transposed)
    bfc     : (1, C)
    Returns (B, C) float32 logits.
    """
    B, L, E = emb.shape
    K = conv_ws[0].shape[-1]
    C = wfc.shape[-1]
    kmax = max(kernel_sizes)
    kn3 = K * len(kernel_sizes)
    assert L >= kmax, "sequence length must be >= the largest conv kernel size"

    # ---- time tiling: chunk size tc (multiple of 16), pooled window wp = num_chunks * tc.
    wp16 = _round_up(L, 16)
    if wp16 <= time_chunk:
        tc, num_chunks = wp16, 1
    else:
        num_chunks = -(-wp16 // time_chunk)
        tc = _round_up(-(-wp16 // num_chunks), 16)
    wp = num_chunks * tc
    lp = wp + _round_up(kmax - 1, 8)          # per-sample halo so every tap stays in range

    use_im2col = E <= 128
    cp = max(128, _round_up(C, 128))

    # ---- batch tiling: target ~512 MXU rows per chunk matmul, >=2 grid steps, VMEM budget.
    if B <= 8:
        tb = B
    else:
        tb = _round_up(max(8, -(-512 // tc)), 8)
        tb = min(tb, _round_up(-(-B // 2), 8))      # keep >= 2 grid steps (v7x megacore)
        tb = max(tb, 8)

        def live_bytes(t):
            emb_buf = 2 * t * lp * E * 2                            # double-buffered bf16 in
            col = 2 * t * tc * (kmax * E if use_im2col else E) * 2  # im2col / tap slices
            score = t * tc * kn3 * 4                                # per-chunk f32 scores
            out_buf = 2 * t * cp * 4                                # double-buffered out
            return emb_buf + col + score + out_buf + t * kn3 * 4

        while tb > 8 and live_bytes(tb) > vmem_budget_bytes:
            tb -= 8
    b_pad = _round_up(B, tb)

    # ---- pad embeddings: (b_pad, lp, E) bf16, zero beyond (B, L).
    emb_p = jnp.zeros((b_pad, lp, E), jnp.bfloat16)
    emb_p = emb_p.at[:B, :L, :].set(emb.astype(jnp.bfloat16))

    # ---- fuse the three convs: zero-pad taps to kmax, concat output channels -> (kmax, E, 3K).
    parts = []
    for w, k in zip(conv_ws, kernel_sizes):
        w = w.astype(jnp.bfloat16)
        if k < kmax:
            w = jnp.concatenate([w, jnp.zeros((kmax - k, E, K), jnp.bfloat16)], axis=0)
        parts.append(w)
    w_all = jnp.concatenate(parts, axis=2)                                    # (kmax, E, 3K)
    w_k = w_all.reshape(kmax * E, kn3) if use_im2col else w_all
    b_all = jnp.concatenate([b.astype(jnp.float32) for b in conv_bs], axis=-1)  # (1, 3K)

    # ---- per-channel valid-time limits (mask generated in-kernel from an iota).
    limits = jnp.concatenate(
        [jnp.full((K,), L - k + 1, jnp.int32) for k in kernel_sizes])[None]   # (1, 3K)

    # ---- FC output channels padded to 128 lanes (unmasked store).
    wfc_p = jnp.zeros((kn3, cp), jnp.bfloat16).at[:, :C].set(wfc.astype(jnp.bfloat16))
    bfc_p = jnp.zeros((1, cp), jnp.float32).at[:, :C].set(bfc.astype(jnp.float32))

    kernel = functools.partial(_lscnn_kernel, tb=tb, tc=tc, num_chunks=num_chunks,
                               kmax=kmax, e=E, kn3=kn3, use_im2col=use_im2col)
    resident = lambda arr: pl.BlockSpec(arr.shape, lambda b: (0,) * arr.ndim)

    out = pl.pallas_call(
        kernel,
        out_shape=jax.ShapeDtypeStruct((b_pad, cp), jnp.float32),
        grid_spec=pltpu.PrefetchScalarGridSpec(
            num_scalar_prefetch=0,
            grid=(b_pad // tb,),
            in_specs=[
                pl.BlockSpec((tb, lp, E), lambda b: (b, 0, 0)),   # TB batch rows per step
                resident(w_k), resident(limits), resident(b_all),
                resident(wfc_p), resident(bfc_p),
            ],
            out_specs=pl.BlockSpec((tb, cp), lambda b: (b, 0)),
            scratch_shapes=[pltpu.VMEM((tb, kn3), jnp.float32)],   # running time-max
        ),
        compiler_params=pltpu.CompilerParams(
            dimension_semantics=("parallel",),
            vmem_limit_bytes=48 << 20,
        ),
    )(emb_p, w_k, limits, b_all, wfc_p, bfc_p)

    return out[:B, :C]


def _reference(emb, conv_ws, conv_bs, wfc, bfc, kernel_sizes):
    # Pure-JAX reference mirroring the PyTorch forward (dynamic mode, eval dropout),
    # with the same bf16 rounding of matmul inputs as the kernel.
    f32 = jnp.float32
    bf = lambda a: a.astype(jnp.bfloat16).astype(f32)
    emb = bf(emb)
    B, L, _ = emb.shape
    feats = []
    for w, b, k in zip(conv_ws, conv_bs, kernel_sizes):
        w = bf(w)
        l_out = L - k + 1
        acc = jnp.zeros((B, l_out, w.shape[-1]), f32)
        for j in range(k):
            acc = acc + jnp.einsum('ble,ek->blk', emb[:, j:j + l_out, :], w[j])
        feats.append(jnp.max(acc, axis=1) + b)
    feat = jnp.concatenate(feats, axis=-1)
    return bf(feat) @ bf(wfc) + bfc


if __name__ == "__main__":
    # Small shapes consistent with the module (kernel_num kept at 128 = default).
    B, L = 2, 16           # batch, sequence length
    E = 32                 # embedding_dim (reduced from 300)
    K = 128                # kernel_num
    VOCAB = 100            # vocab_size (reduced from 15300)
    C = 2                  # num_classes
    KS = (3, 5, 7)         # kernel_size

    key = jax.random.PRNGKey(0)
    keys = jax.random.split(key, 10)

    tokens = jax.random.randint(keys[0], (B, L), 0, VOCAB)
    emb_table = jax.random.normal(keys[1], (VOCAB, E), jnp.float32) * 0.1

    # Conv1d weights: PyTorch shape (K, E, k) -> kernel layout (k, E, K).
    conv_ws = [jax.random.normal(keys[2 + i], (k, E, K), jnp.float32) * 0.05
               for i, k in enumerate(KS)]
    conv_bs = [jax.random.normal(keys[5 + i], (1, K), jnp.float32) * 0.05
               for i in range(len(KS))]

    # FC: PyTorch (C, 3K) -> kernel layout (3K, C).
    wfc = jax.random.normal(keys[8], (K * len(KS), C), jnp.float32) * 0.05
    bfc = jax.random.normal(keys[9], (1, C), jnp.float32) * 0.05

    # Embedding lookup (glue, plain JAX gather); table cast to bf16 BEFORE the gather.
    emb = jnp.take(emb_table.astype(jnp.bfloat16), tokens, axis=0)   # (B, L, E) bf16

    out = lscnn_forward(emb, conv_ws, conv_bs, wfc, bfc, kernel_sizes=KS)
    out = jax.block_until_ready(out)

    ref = _reference(emb, conv_ws, conv_bs, wfc, bfc, KS)
    assert out.shape == (B, C), out.shape
    assert jnp.allclose(out, ref, atol=2e-3, rtol=2e-3), (out, ref)

    print("KERNEL_OK")
</pallas_src>

<mosaic_0001>
module attributes {stable_mosaic.version = 11 : i64} {
  func.func @_lscnn_kernel(%arg0: i32, %arg1: memref<2x24x32xbf16, #tpu.memory_space<vmem>>, %arg2: memref<224x384xbf16, #tpu.memory_space<vmem>>, %arg3: memref<1x384xi32, #tpu.memory_space<vmem>>, %arg4: memref<1x384xf32, #tpu.memory_space<vmem>>, %arg5: memref<384x128xbf16, #tpu.memory_space<vmem>>, %arg6: memref<1x128xf32, #tpu.memory_space<vmem>>, %arg7: memref<2x128xf32, #tpu.memory_space<vmem>>, %arg8: memref<2x384xf32, #tpu.memory_space<vmem>>) attributes {dimension_semantics = [#tpu.dimension_semantics<parallel>], iteration_bounds = array<i64: 1>, scalar_prefetch = 0 : i64, scratch_operands = 1 : i64, tpu.core_type = #tpu.core_type<tc>, window_params = [{transform_indices = @transform_0, window_bounds = array<i64: 2, 24, 32>}, {pipeline_mode = #tpu.pipeline_mode<synchronous>, transform_indices = @transform_1, window_bounds = array<i64: 224, 384>}, {pipeline_mode = #tpu.pipeline_mode<synchronous>, transform_indices = @transform_2, window_bounds = array<i64: 1, 384>}, {pipeline_mode = #tpu.pipeline_mode<synchronous>, transform_indices = @transform_3, window_bounds = array<i64: 1, 384>}, {pipeline_mode = #tpu.pipeline_mode<synchronous>, transform_indices = @transform_4, window_bounds = array<i64: 384, 128>}, {pipeline_mode = #tpu.pipeline_mode<synchronous>, transform_indices = @transform_5, window_bounds = array<i64: 1, 128>}, {transform_indices = @transform_6, window_bounds = array<i64: 2, 128>}]} {
    %c0 = arith.constant 0 : index
    %c0_0 = arith.constant 0 : index
    %0 = vector.load %arg3[%c0, %c0_0] : memref<1x384xi32, #tpu.memory_space<vmem>>, vector<1x384xi32>
    %c0_1 = arith.constant 0 : index
    %c0_2 = arith.constant 0 : index
    %c0_3 = arith.constant 0 : index
    %1 = vector.load %arg1[%c0_1, %c0_2, %c0_3] : memref<2x24x32xbf16, #tpu.memory_space<vmem>>, vector<2x16x32xbf16>
    %c0_4 = arith.constant 0 : index
    %c1 = arith.constant 1 : index
    %c0_5 = arith.constant 0 : index
    %2 = vector.load %arg1[%c0_4, %c1, %c0_5] : memref<2x24x32xbf16, #tpu.memory_space<vmem>>, vector<2x16x32xbf16>
    %c0_6 = arith.constant 0 : index
    %c2 = arith.constant 2 : index
    %c0_7 = arith.constant 0 : index
    %3 = vector.load %arg1[%c0_6, %c2, %c0_7] : memref<2x24x32xbf16, #tpu.memory_space<vmem>>, vector<2x16x32xbf16>
    %c0_8 = arith.constant 0 : index
    %c3 = arith.constant 3 : index
    %c0_9 = arith.constant 0 : index
    %4 = vector.load %arg1[%c0_8, %c3, %c0_9] : memref<2x24x32xbf16, #tpu.memory_space<vmem>>, vector<2x16x32xbf16>
    %c0_10 = arith.constant 0 : index
    %c4 = arith.constant 4 : index
    %c0_11 = arith.constant 0 : index
    %5 = vector.load %arg1[%c0_10, %c4, %c0_11] : memref<2x24x32xbf16, #tpu.memory_space<vmem>>, vector<2x16x32xbf16>
    %c0_12 = arith.constant 0 : index
    %c5 = arith.constant 5 : index
    %c0_13 = arith.constant 0 : index
    %6 = vector.load %arg1[%c0_12, %c5, %c0_13] : memref<2x24x32xbf16, #tpu.memory_space<vmem>>, vector<2x16x32xbf16>
    %c0_14 = arith.constant 0 : index
    %c6 = arith.constant 6 : index
    %c0_15 = arith.constant 0 : index
    %7 = vector.load %arg1[%c0_14, %c6, %c0_15] : memref<2x24x32xbf16, #tpu.memory_space<vmem>>, vector<2x16x32xbf16>
    %8 = tpu.concatenate %1, %2, %3, %4, %5, %6, %7 in 2 : vector<2x16x32xbf16>, vector<2x16x32xbf16>, vector<2x16x32xbf16>, vector<2x16x32xbf16>, vector<2x16x32xbf16>, vector<2x16x32xbf16>, vector<2x16x32xbf16> -> vector<2x16x224xbf16>
    %9 = vector.shape_cast %8 : vector<2x16x224xbf16> to vector<32x224xbf16>
    %c0_16 = arith.constant 0 : index
    %c0_17 = arith.constant 0 : index
    %10 = vector.load %arg2[%c0_16, %c0_17] : memref<224x384xbf16, #tpu.memory_space<vmem>>, vector<224x384xbf16>
    %cst = arith.constant dense<0.000000e+00> : vector<32x384xf32>
    %11 = tpu.matmul %9, %10, %cst {dimension_numbers = #tpu.dot_dimension_numbers<[1], [0], [0], [1], [0, 0, 1, 1], [], []>} : vector<32x224xbf16>, vector<224x384xbf16>, vector<32x384xf32> -> vector<32x384xf32>
    %12 = vector.shape_cast %11 : vector<32x384xf32> to vector<2x16x384xf32>
    %13 = tpu.iota {dimensions = array<i32: 0>} : vector<16x384xi32>
    %c0_i32 = arith.constant 0 : i32
    %14 = vector.broadcast %c0_i32 : i32 to vector<16x384xi32>
    %15 = arith.addi %14, %13 : vector<16x384xi32>
    %16 = vector.broadcast %0 : vector<1x384xi32> to vector<16x384xi32>
    %17 = arith.cmpi slt, %15, %16 : vector<16x384xi32>
    %18 = vector.shape_cast %17 : vector<16x384xi1> to vector<1x16x384xi1>
    %cst_18 = arith.constant -3.40282347E+38 : f32
    %19 = vector.shape_cast %18 : vector<1x16x384xi1> to vector<1x16x384xi1>
    %20 = vector.broadcast %19 : vector<1x16x384xi1> to vector<2x16x384xi1>
    %21 = vector.broadcast %cst_18 : f32 to vector<2x16x384xf32>
    %22 = arith.select %20, %12, %21 : vector<2x16x384xi1>, vector<2x16x384xf32>
    %cst_19 = arith.constant dense<0xFF800000> : vector<2x384xf32>
    %23 = vector.multi_reduction <maximumf>, %22, %cst_19 [1] : vector<2x16x384xf32> to vector<2x384xf32>
    %c0_20 = arith.constant 0 : index
    %c0_21 = arith.constant 0 : index
    %24 = vector.load %arg8[%c0_20, %c0_21] : memref<2x384xf32, #tpu.memory_space<vmem>>, vector<2x384xf32>
    tpu.vector_store %arg8[%c0_20, %c0_21], %23 {strides = array<i32>} : memref<2x384xf32, #tpu.memory_space<vmem>>, vector<2x384xf32>,
    %c0_22 = arith.constant 0 : index
    %c0_23 = arith.constant 0 : index
    %25 = vector.load %arg8[%c0_22, %c0_23] : memref<2x384xf32, #tpu.memory_space<vmem>>, vector<2x384xf32>
    %c0_24 = arith.constant 0 : index
    %c0_25 = arith.constant 0 : index
    %26 = vector.load %arg4[%c0_24, %c0_25] : memref<1x384xf32, #tpu.memory_space<vmem>>, vector<1x384xf32>
    %27 = vector.broadcast %26 : vector<1x384xf32> to vector<2x384xf32>
    %28 = arith.addf %25, %27 : vector<2x384xf32>
    %29 = arith.truncf %28 : vector<2x384xf32> to vector<2x384xbf16>
    %c0_26 = arith.constant 0 : index
    %c0_27 = arith.constant 0 : index
    %30 = vector.load %arg5[%c0_26, %c0_27] : memref<384x128xbf16, #tpu.memory_space<vmem>>, vector<384x128xbf16>
    %cst_28 = arith.constant dense<0.000000e+00> : vector<2x128xf32>
    %31 = tpu.matmul %29, %30, %cst_28 {dimension_numbers = #tpu.dot_dimension_numbers<[1], [0], [0], [1], [0, 0, 1, 1], [], []>} : vector<2x384xbf16>, vector<384x128xbf16>, vector<2x128xf32> -> vector<2x128xf32>
    %c0_29 = arith.constant 0 : index
    %c0_30 = arith.constant 0 : index
    %32 = vector.load %arg6[%c0_29, %c0_30] : memref<1x128xf32, #tpu.memory_space<vmem>>, vector<1x128xf32>
    %33 = vector.broadcast %32 : vector<1x128xf32> to vector<2x128xf32>
    %34 = arith.addf %31, %33 : vector<2x128xf32>
    %c0_31 = arith.constant 0 : index
    %c0_32 = arith.constant 0 : index
    %35 = vector.load %arg7[%c0_31, %c0_32] : memref<2x128xf32, #tpu.memory_space<vmem>>, vector<2x128xf32>
    tpu.vector_store %arg7[%c0_31, %c0_32], %34 {strides = array<i32>} : memref<2x128xf32, #tpu.memory_space<vmem>>, vector<2x128xf32>,
    return
  }
  func.func @transform_0(%arg0: i32) -> (i32, i32, i32) {
    %c0_i32 = arith.constant 0 : i32
    %c0_i32_0 = arith.constant 0 : i32
    %c0_i32_1 = arith.constant 0 : i32
    return %arg0, %c0_i32, %c0_i32_0 : i32, i32, i32
  }
  func.func @transform_1(%arg0: i32) -> (i32, i32) {
    %c0_i32 = arith.constant 0 : i32
    %c0_i32_0 = arith.constant 0 : i32
    %c0_i32_1 = arith.constant 0 : i32
    return %c0_i32, %c0_i32_0 : i32, i32
  }
  func.func @transform_2(%arg0: i32) -> (i32, i32) {
    %c0_i32 = arith.constant 0 : i32
    %c0_i32_0 = arith.constant 0 : i32
    %c0_i32_1 = arith.constant 0 : i32
    return %c0_i32, %c0_i32_0 : i32, i32
  }
  func.func @transform_3(%arg0: i32) -> (i32, i32) {
    %c0_i32 = arith.constant 0 : i32
    %c0_i32_0 = arith.constant 0 : i32
    %c0_i32_1 = arith.constant 0 : i32
    return %c0_i32, %c0_i32_0 : i32, i32
  }
  func.func @transform_4(%arg0: i32) -> (i32, i32) {
    %c0_i32 = arith.constant 0 : i32
    %c0_i32_0 = arith.constant 0 : i32
    %c0_i32_1 = arith.constant 0 : i32
    return %c0_i32, %c0_i32_0 : i32, i32
  }
  func.func @transform_5(%arg0: i32) -> (i32, i32) {
    %c0_i32 = arith.constant 0 : i32
    %c0_i32_0 = arith.constant 0 : i32
    %c0_i32_1 = arith.constant 0 : i32
    return %c0_i32, %c0_i32_0 : i32, i32
  }
  func.func @transform_6(%arg0: i32) -> (i32, i32) {
    %c0_i32 = arith.constant 0 : i32
    %c0_i32_0 = arith.constant 0 : i32
    return %arg0, %c0_i32 : i32, i32
  }
}

</mosaic_0001>

<llo_original>
// kernel: tpu_custom_call.1
$region0: #{tpu_custom_call.1}
  #allocation0 [shape = 'u32[]', space=smem, size = 0x4, offset = 0x4, fixed_abs, tag = 'smem constant byte address 0x4 - core index']
  #allocation1 [shape = 'u32[144,128]{1,0:T(1,128)}', space=vmem, size = 0x12000, scoped, tag = 'internal scratch']
  #allocation2 [shape = 'f32[2,384]{1,0:T(2,128)}', space=vmem, size = 0xc00, scoped, tag = 'scratch operand']
  %s0 = inlined_call_operand.hbm [shape: bf16[2,24,32], index: 0, kind: input, shape index: {}]
  %s1 = inlined_call_operand.hbm [shape: bf16[224,384], index: 1, kind: input, shape index: {}]
  %s2 = inlined_call_operand.vmem [shape: s32[1,384], index: 2, kind: input, shape index: {}]
  %s3 = inlined_call_operand.vmem [shape: f32[1,384], index: 3, kind: input, shape index: {}]
  %s4 = inlined_call_operand.hbm [shape: bf16[384,128], index: 4, kind: input, shape index: {}]
  %s5 = inlined_call_operand.vmem [shape: f32[1,128], index: 5, kind: input, shape index: {}]
  %s6 = inlined_call_operand.hbm [shape: f32[2,128], index: 6, kind: output, shape index: {}]
  %s7 = sld [smem:[#allocation0]]
  $region46: #{tpu_custom_call.1} parent=0
    _
  %s9 = ssub.s32 1, %s7
  %s10 = scalar_select 0, %s9, %s7
  $region1: #{tpu_custom_call.1} parent=0
    #allocation3 [shape = 'u8[12288]{0}', space=vmem, size = 0x3000, scoped, tag = 'input window, operand 0, single buffered']
    #allocation4 [shape = 's32[1]{0}', space=sflag, size = 0x4, scoped, tag = 'scoped memory for tpu_custom_call.1']
    #allocation5 [shape = 's32[1]{0}', space=sflag, size = 0x4, scoped, tag = 'scoped memory for tpu_custom_call.1']
    #allocation6 [shape = 'u8[172032]{0}', space=vmem, size = 0x2a000, scoped, tag = 'input window, operand 1, single buffered']
    #allocation7 [shape = 's32[1]{0}', space=sflag, size = 0x4, scoped, tag = 'scoped memory for tpu_custom_call.1']
    #allocation8 [shape = 'u8[98304]{0}', space=vmem, size = 0x18000, scoped, tag = 'input window, operand 4, single buffered']
    #allocation9 [shape = 'u8[1024]{0}', space=vmem, size = 0x400, scoped, tag = 'output window, operand 0, single buffered']
    %11 = vsyncpa [#allocation4], 0
    %12 = vsyncpa [#allocation7], 0
    %13 = vsyncpa [#allocation5], 0
    // Predicated region
    $region2: #{tpu_custom_call.1} parent=1 // pred_check
      _
    $region3: #{tpu_custom_call.1} parent=1 // pred_check_branch
      %15 = sbr.rel (0) target = $region5
    $region4: #{tpu_custom_call.1} parent=1 // pred_region
      %s17 = ssub.s32 384, 384
      %18 = vsyncadd [#allocation4], %s17
      %s19 = sshll.u32 [#allocation3], 4
      %s20 = int_to_ptr.vmem [resolvable:$true] %s19
      %25 = dma.hbm_to_vmem [thread:$0]  %s0, 384, %s20, [#allocation4], 64, 64, 4
    $region5: #{tpu_custom_call.1} parent=1 // pred_fallthru
      _
    // Predicated region
    $region6: #{tpu_custom_call.1} parent=1 // pred_check
      _
    $region7: #{tpu_custom_call.1} parent=1 // pred_check_branch
      %27 = sbr.rel (0) target = $region9
    $region8: #{tpu_custom_call.1} parent=1 // pred_region
      %s29 = ssub.s32 5376, 5376
      %30 = vsyncadd [#allocation7], %s29
      %s31 = sshll.u32 [#allocation6], 4
      %s32 = int_to_ptr.vmem [resolvable:$true] %s31
      %37 = dma.hbm_to_vmem [thread:$0]  %s1, 5376, %s32, [#allocation7], 192, 192, 12
    $region9: #{tpu_custom_call.1} parent=1 // pred_fallthru
      _
    // Predicated region
    $region10: #{tpu_custom_call.1} parent=1 // pred_check
      _
    $region11: #{tpu_custom_call.1} parent=1 // pred_check_branch
      %39 = sbr.rel (0) target = $region13
    $region12: #{tpu_custom_call.1} parent=1 // pred_region
      _
    $region13: #{tpu_custom_call.1} parent=1 // pred_fallthru
      _
    // Predicated region
    $region14: #{tpu_custom_call.1} parent=1 // pred_check
      _
    $region15: #{tpu_custom_call.1} parent=1 // pred_check_branch
      %41 = sbr.rel (0) target = $region17
    $region16: #{tpu_custom_call.1} parent=1 // pred_region
      _
    $region17: #{tpu_custom_call.1} parent=1 // pred_fallthru
      _
    // Predicated region
    $region18: #{tpu_custom_call.1} parent=1 // pred_check
      _
    $region19: #{tpu_custom_call.1} parent=1 // pred_check_branch
      %43 = sbr.rel (0) target = $region21
    $region20: #{tpu_custom_call.1} parent=1 // pred_region
      %s45 = ssub.s32 3072, 3072
      %46 = vsyncadd [#allocation7], %s45
      %s47 = sshll.u32 [#allocation8], 4
      %s48 = int_to_ptr.vmem [resolvable:$true] %s47
      %53 = dma.hbm_to_vmem [thread:$0]  %s4, 3072, %s48, [#allocation7], 64, 64, 4
    $region21: #{tpu_custom_call.1} parent=1 // pred_fallthru
      _
    // Predicated region
    $region22: #{tpu_custom_call.1} parent=1 // pred_check
      _
    $region23: #{tpu_custom_call.1} parent=1 // pred_check_branch
      %55 = sbr.rel (0) target = $region25
    $region24: #{tpu_custom_call.1} parent=1 // pred_region
      _
    $region25: #{tpu_custom_call.1} parent=1 // pred_fallthru
      _
    // Predicated region
    $region26: #{tpu_custom_call.1} parent=1 // pred_check
      _
    $region27: #{tpu_custom_call.1} parent=1 // pred_check_branch
      %57 = sbr.rel (0) target = $region29
    $region28: #{tpu_custom_call.1} parent=1 // pred_region
      %58 = dma.done [#allocation4], 384
    $region29: #{tpu_custom_call.1} parent=1 // pred_fallthru
      _
    // Predicated region
    $region30: #{tpu_custom_call.1} parent=1 // pred_check
      _
    $region31: #{tpu_custom_call.1} parent=1 // pred_check_branch
      %60 = sbr.rel (0) target = $region33
    $region32: #{tpu_custom_call.1} parent=1 // pred_region
      %61 = dma.done [#allocation7], 5376
    $region33: #{tpu_custom_call.1} parent=1 // pred_fallthru
      _
    // Predicated region
    $region34: #{tpu_custom_call.1} parent=1 // pred_check
      _
    $region35: #{tpu_custom_call.1} parent=1 // pred_check_branch
      %63 = sbr.rel (0) target = $region37
    $region36: #{tpu_custom_call.1} parent=1 // pred_region
      %64 = dma.done [#allocation7], 3072
    $region37: #{tpu_custom_call.1} parent=1 // pred_fallthru
      _
    %v66 = vld [vmem:[%s2] sm:$0x7]
    %v67 = vld [vmem:[#allocation3] sm:$0xf]
    %v68 = vld [vmem:[#allocation3 + $0x4] sm:$0xf]
    %v69 = vld [vmem:[#allocation3 + $0xc] sm:$0xf]
    %v70 = vld [vmem:[#allocation3 + $0x10] sm:$0xf]
    %v71 = vld [vmem:[#allocation3 + $0x8] sm:$0x1]
    %v72 = vld [vmem:[#allocation3 + $0x14] sm:$0x1]
    %v73 = vld [vmem:[#allocation3] sm:$0xe]
    %v74 = vld [vmem:[#allocation3 + $0xc] sm:$0xe]
    %v75 = vld [vmem:[#allocation3 + $0x8] sm:$0x3]
    %v76 = vld [vmem:[#allocation3 + $0x14] sm:$0x3]
    %v77 = vld [vmem:[#allocation3] sm:$0xc]
    %v78 = vld [vmem:[#allocation3 + $0xc] sm:$0xc]
    %v79 = vld [vmem:[#allocation3 + $0x8] sm:$0x7]
    %v80 = vld [vmem:[#allocation3 + $0x14] sm:$0x7]
    %v81 = vld [vmem:[#allocation3] sm:$0x8]
    %v82 = vld [vmem:[#allocation3 + $0xc] sm:$0x8]
    %v87 = vunpack.c.l.b16 %v67
    %v88 = vunpack.c.l.b16 %v68
    %v89 = vunpack.c.l.b16 %v69
    %v90 = vunpack.c.l.b16 %v70
    %v91 = vpack.c.b16 %v88, %v87
    %v92 = vpack.c.b16 %v90, %v89
    %v95 = vunpack.c.l.b16 %v71
    %v96 = vunpack.c.l.b16 %v72
    %v97 = vpack.c.b16 %v95, %v95
    %v98 = vpack.c.b16 %v96, %v96
    %vm99 = vsmask.f32 7424
    %v101 = vshrl.u32 %v91, 16
    %v103 = vshll.u32 %v91, 16
    %v105 = vrot.slane %v103, 1
    %v106 = vor.u32 %v101, %v105
    %v108 = vshll.u32 %v97, 16
    %v110 = vrot.slane %v108, 1
    %v111 = vsel %vm99, %v106, %v110
    %v113 = vshrl.u32 %v92, 16
    %v115 = vshll.u32 %v92, 16
    %v117 = vrot.slane %v115, 1
    %v118 = vor.u32 %v113, %v117
    %v120 = vshll.u32 %v98, 16
    %v122 = vrot.slane %v120, 1
    %v123 = vsel %vm99, %v118, %v122
    %124 = vrot.lane.b32.xlu0 %v111, 32
    %v125 = vpop.permute.xlu0 %124
    %126 = vrot.lane.b32.xlu0 %v123, 32
    %v127 = vpop.permute.xlu0 %126
    %v130 = vunpack.c.l.b16 %v73
    %v131 = vunpack.c.l.b16 %v74
    %v132 = vpack.c.b16 %v88, %v130
    %v133 = vpack.c.b16 %v90, %v131
    %vm134 = vcmask 1046528
    %v135 = vrot.slane %v132, 1
    %v136 = vrot.slane %v97, 1
    %v137 = vsel %vm134, %v135, %v136
    %v138 = vrot.slane %v133, 1
    %v139 = vrot.slane %v98, 1
    %v140 = vsel %vm134, %v138, %v139
    %141 = vrot.lane.b32.xlu0 %v137, 64
    %v142 = vpop.permute.xlu0 %141
    %143 = vrot.lane.b32.xlu0 %v140, 64
    %v144 = vpop.permute.xlu0 %143
    %v147 = vunpack.c.l.b16 %v75
    %v148 = vunpack.c.l.b16 %v76
    %v149 = vpack.c.b16 %v147, %v147
    %v150 = vpack.c.b16 %v148, %v148
    %vm151 = vsmask.f32 6400
    %v153 = vshrl.u32 %v132, 16
    %v155 = vrot.slane %v153, 1
    %v156 = vshll.u32 %v132, 16
    %v158 = vrot.slane %v156, 2
    %v159 = vor.u32 %v155, %v158
    %v161 = vshrl.u32 %v149, 16
    %v163 = vrot.slane %v161, 1
    %v164 = vshll.u32 %v149, 16
    %v166 = vrot.slane %v164, 2
    %v167 = vor.u32 %v163, %v166
    %v168 = vsel %vm151, %v159, %v167
    %v170 = vshrl.u32 %v133, 16
    %v172 = vrot.slane %v170, 1
    %v173 = vshll.u32 %v133, 16
    %v175 = vrot.slane %v173, 2
    %v176 = vor.u32 %v172, %v175
    %v178 = vshrl.u32 %v150, 16
    %v180 = vrot.slane %v178, 1
    %v181 = vshll.u32 %v150, 16
    %v183 = vrot.slane %v181, 2
    %v184 = vor.u32 %v180, %v183
    %v185 = vsel %vm151, %v176, %v184
    %186 = vrot.lane.b32.xlu0 %v168, 96
    %v187 = vpop.permute.xlu0 %186
    %188 = vrot.lane.b32.xlu0 %v185, 96
    %v189 = vpop.permute.xlu0 %188
    %v192 = vunpack.c.l.b16 %v77
    %v193 = vunpack.c.l.b16 %v78
    %v194 = vpack.c.b16 %v88, %v192
    %v195 = vpack.c.b16 %v90, %v193
    %vm196 = vcmask 1045504
    %v197 = vrot.slane %v194, 2
    %v198 = vrot.slane %v149, 2
    %v199 = vsel %vm196, %v197, %v198
    %v200 = vrot.slane %v195, 2
    %v201 = vrot.slane %v150, 2
    %v202 = vsel %vm196, %v200, %v201
    %v205 = vunpack.c.l.b16 %v79
    %v206 = vunpack.c.l.b16 %v80
    %v207 = vpack.c.b16 %v205, %v205
    %v208 = vpack.c.b16 %v206, %v206
    %vm209 = vsmask.f32 5376
    %v211 = vshrl.u32 %v194, 16
    %v213 = vrot.slane %v211, 2
    %v214 = vshll.u32 %v194, 16
    %v216 = vrot.slane %v214, 3
    %v217 = vor.u32 %v213, %v216
    %v219 = vshrl.u32 %v207, 16
    %v221 = vrot.slane %v219, 2
    %v222 = vshll.u32 %v207, 16
    %v224 = vrot.slane %v222, 3
    %v225 = vor.u32 %v221, %v224
    %v226 = vsel %vm209, %v217, %v225
    %v228 = vshrl.u32 %v195, 16
    %v230 = vrot.slane %v228, 2
    %v231 = vshll.u32 %v195, 16
    %v233 = vrot.slane %v231, 3
    %v234 = vor.u32 %v230, %v233
    %v236 = vshrl.u32 %v208, 16
    %v238 = vrot.slane %v236, 2
    %v239 = vshll.u32 %v208, 16
    %v241 = vrot.slane %v239, 3
    %v242 = vor.u32 %v238, %v241
    %v243 = vsel %vm209, %v234, %v242
    %244 = vrot.lane.b32.xlu0 %v226, 32
    %v245 = vpop.permute.xlu0 %244
    %246 = vrot.lane.b32.xlu0 %v243, 32
    %v247 = vpop.permute.xlu0 %246
    %v250 = vunpack.c.l.b16 %v81
    %v251 = vunpack.c.l.b16 %v82
    %v252 = vpack.c.b16 %v88, %v250
    %v253 = vpack.c.b16 %v90, %v251
    %vm254 = vcmask 1044480
    %v255 = vrot.slane %v252, 3
    %v256 = vrot.slane %v207, 3
    %v257 = vsel %vm254, %v255, %v256
    %v258 = vrot.slane %v253, 3
    %v259 = vrot.slane %v208, 3
    %v260 = vsel %vm254, %v258, %v259
    %261 = vrot.lane.b32.xlu0 %v257, 64
    %v262 = vpop.permute.xlu0 %261
    %263 = vrot.lane.b32.xlu0 %v260, 64
    %v264 = vpop.permute.xlu0 %263
    %vm265 = vcmask 261120
    %v267 = vsel %vm265, %v91, %v125
    %v269 = vsel %vm265, %v92, %v127
    %vm270 = vcmask 523264
    %v272 = vsel %vm270, %v267, %v142
    %v274 = vsel %vm270, %v269, %v144
    %vm275 = vcmask 785408
    %v277 = vsel %vm275, %v272, %v187
    %v280 = vsel %vm275, %v274, %v189
    %v284 = vsel %vm265, %v199, %v245
    %v287 = vsel %vm265, %v202, %v247
    %v289 = vsel %vm270, %v284, %v262
    %v291 = vsel %vm270, %v287, %v264
    %v292 = vld [vmem:[#allocation6] sm:$0xff]
    %v293 = vld [vmem:[#allocation6 + $0x8] sm:$0xf]
    %v294 = vld [vmem:[#allocation6 + $0xc] sm:$0xff]
    %v295 = vld [vmem:[#allocation6 + $0x14] sm:$0xf]
    %v296 = vld [vmem:[#allocation6 + $0x18] sm:$0xff]
    %v297 = vld [vmem:[#allocation6 + $0x20] sm:$0xf]
    %v298 = vld [vmem:[#allocation6 + $0x24] sm:$0xff]
    %v299 = vld [vmem:[#allocation6 + $0x2c] sm:$0xf]
    %v300 = vld [vmem:[#allocation6 + $0x30] sm:$0xff]
    %v301 = vld [vmem:[#allocation6 + $0x38] sm:$0xf]
    %v302 = vld [vmem:[#allocation6 + $0x3c] sm:$0xff]
    %v303 = vld [vmem:[#allocation6 + $0x44] sm:$0xf]
    %v304 = vld [vmem:[#allocation6 + $0x48] sm:$0xff]
    %v305 = vld [vmem:[#allocation6 + $0x50] sm:$0xf]
    %v306 = vld [vmem:[#allocation6 + $0x54] sm:$0xff]
    %v307 = vld [vmem:[#allocation6 + $0x5c] sm:$0xf]
    %v308 = vld [vmem:[#allocation6 + $0x60] sm:$0xff]
    %v309 = vld [vmem:[#allocation6 + $0x68] sm:$0xf]
    %v310 = vld [vmem:[#allocation6 + $0x6c] sm:$0xff]
    %v311 = vld [vmem:[#allocation6 + $0x74] sm:$0xf]
    %v312 = vld [vmem:[#allocation6 + $0x78] sm:$0xff]
    %v313 = vld [vmem:[#allocation6 + $0x80] sm:$0xf]
    %v314 = vld [vmem:[#allocation6 + $0x84] sm:$0xff]
    %v315 = vld [vmem:[#allocation6 + $0x8c] sm:$0xf]
    %v316 = vld [vmem:[#allocation6 + $0x90] sm:$0xff]
    %v317 = vld [vmem:[#allocation6 + $0x98] sm:$0xf]
    %v318 = vld [vmem:[#allocation6 + $0x9c] sm:$0xff]
    %v319 = vld [vmem:[#allocation6 + $0xa4] sm:$0xf]
    %v320 = vld [vmem:[#allocation6 + $0xa8] sm:$0xff]
    %v321 = vld [vmem:[#allocation6 + $0xb0] sm:$0xf]
    %v322 = vld [vmem:[#allocation6 + $0xb4] sm:$0xff]
    %v323 = vld [vmem:[#allocation6 + $0xbc] sm:$0xf]
    %v324 = vld [vmem:[#allocation6 + $0xc0] sm:$0xff]
    %v325 = vld [vmem:[#allocation6 + $0xc8] sm:$0xf]
    %v326 = vld [vmem:[#allocation6 + $0xcc] sm:$0xff]
    %v327 = vld [vmem:[#allocation6 + $0xd4] sm:$0xf]
    %v328 = vld [vmem:[#allocation6 + $0xd8] sm:$0xff]
    %v329 = vld [vmem:[#allocation6 + $0xe0] sm:$0xf]
    %v330 = vld [vmem:[#allocation6 + $0xe4] sm:$0xff]
    %v331 = vld [vmem:[#allocation6 + $0xec] sm:$0xf]
    %v332 = vld [vmem:[#allocation6 + $0xf0] sm:$0xff]
    %v333 = vld [vmem:[#allocation6 + $0xf8] sm:$0xf]
    %v334 = vld [vmem:[#allocation6 + $0xfc] sm:$0xff]
    %v335 = vld [vmem:[#allocation6 + $0x104] sm:$0xf]
    %v336 = vld [vmem:[#allocation6 + $0x108] sm:$0xff]
    %v337 = vld [vmem:[#allocation6 + $0x110] sm:$0xf]
    %v338 = vld [vmem:[#allocation6 + $0x114] sm:$0xff]
    %v339 = vld [vmem:[#allocation6 + $0x11c] sm:$0xf]
    %v340 = vld [vmem:[#allocation6 + $0x120] sm:$0xff]
    %v341 = vld [vmem:[#allocation6 + $0x128] sm:$0xf]
    %v342 = vld [vmem:[#allocation6 + $0x12c] sm:$0xff]
    %v343 = vld [vmem:[#allocation6 + $0x134] sm:$0xf]
    %v344 = vld [vmem:[#allocation6 + $0x138] sm:$0xff]
    %v345 = vld [vmem:[#allocation6 + $0x140] sm:$0xf]
    %v346 = vld [vmem:[#allocation6 + $0x144] sm:$0xff]
    %v347 = vld [vmem:[#allocation6 + $0x14c] sm:$0xf]
    %v404 = vunpack.c.l.b16 %v292
    %v405 = vunpack.c.h.b16 %v292
    %v406 = vunpack.c.l.b16 %v293
    %v407 = vunpack.c.l.b16 %v294
    %v408 = vunpack.c.h.b16 %v294
    %v409 = vunpack.c.l.b16 %v295
    %v410 = vunpack.c.l.b16 %v296
    %v411 = vunpack.c.h.b16 %v296
    %v412 = vunpack.c.l.b16 %v297
    %v413 = vunpack.c.l.b16 %v298
    %v414 = vunpack.c.h.b16 %v298
    %v415 = vunpack.c.l.b16 %v299
    %v416 = vunpack.c.l.b16 %v300
    %v417 = vunpack.c.h.b16 %v300
    %v418 = vunpack.c.l.b16 %v301
    %v419 = vunpack.c.l.b16 %v302
    %v420 = vunpack.c.h.b16 %v302
    %v421 = vunpack.c.l.b16 %v303
    %v422 = vunpack.c.l.b16 %v304
    %v423 = vunpack.c.h.b16 %v304
    %v424 = vunpack.c.l.b16 %v305
    %v425 = vunpack.c.l.b16 %v306
    %v426 = vunpack.c.h.b16 %v306
    %v427 = vunpack.c.l.b16 %v307
    %v428 = vunpack.c.l.b16 %v308
    %v429 = vunpack.c.h.b16 %v308
    %v430 = vunpack.c.l.b16 %v309
    %v431 = vunpack.c.l.b16 %v310
    %v432 = vunpack.c.h.b16 %v310
    %v433 = vunpack.c.l.b16 %v311
    %v434 = vunpack.c.l.b16 %v312
    %v435 = vunpack.c.h.b16 %v312
    %v436 = vunpack.c.l.b16 %v313
    %v437 = vunpack.c.l.b16 %v314
    %v438 = vunpack.c.h.b16 %v314
    %v439 = vunpack.c.l.b16 %v315
    %v440 = vunpack.c.l.b16 %v316
    %v441 = vunpack.c.h.b16 %v316
    %v442 = vunpack.c.l.b16 %v317
    %v443 = vunpack.c.l.b16 %v318
    %v444 = vunpack.c.h.b16 %v318
    %v445 = vunpack.c.l.b16 %v319
    %v446 = vunpack.c.l.b16 %v320
    %v447 = vunpack.c.h.b16 %v320
    %v448 = vunpack.c.l.b16 %v321
    %v449 = vunpack.c.l.b16 %v322
    %v450 = vunpack.c.h.b16 %v322
    %v451 = vunpack.c.l.b16 %v323
    %v452 = vunpack.c.l.b16 %v324
    %v453 = vunpack.c.h.b16 %v324
    %v454 = vunpack.c.l.b16 %v325
    %v455 = vunpack.c.l.b16 %v326
    %v456 = vunpack.c.h.b16 %v326
    %v457 = vunpack.c.l.b16 %v327
    %v458 = vunpack.c.l.b16 %v328
    %v459 = vunpack.c.h.b16 %v328
    %v460 = vunpack.c.l.b16 %v329
    %v461 = vunpack.c.l.b16 %v330
    %v462 = vunpack.c.h.b16 %v330
    %v463 = vunpack.c.l.b16 %v331
    %v464 = vunpack.c.l.b16 %v332
    %v465 = vunpack.c.h.b16 %v332
    %v466 = vunpack.c.l.b16 %v333
    %v467 = vunpack.c.l.b16 %v334
    %v468 = vunpack.c.h.b16 %v334
    %v469 = vunpack.c.l.b16 %v335
    %v470 = vunpack.c.l.b16 %v336
    %v471 = vunpack.c.h.b16 %v336
    %v472 = vunpack.c.l.b16 %v337
    %v473 = vunpack.c.l.b16 %v338
    %v474 = vunpack.c.h.b16 %v338
    %v475 = vunpack.c.l.b16 %v339
    %v476 = vunpack.c.l.b16 %v340
    %v477 = vunpack.c.h.b16 %v340
    %v478 = vunpack.c.l.b16 %v341
    %v479 = vunpack.c.l.b16 %v342
    %v480 = vunpack.c.h.b16 %v342
    %v481 = vunpack.c.l.b16 %v343
    %v482 = vunpack.c.l.b16 %v344
    %v483 = vunpack.c.h.b16 %v344
    %v484 = vunpack.c.l.b16 %v345
    %v485 = vunpack.c.l.b16 %v346
    %v486 = vunpack.c.h.b16 %v346
    %v487 = vunpack.c.l.b16 %v347
    %v488 = vpack.c.b16 %v407, %v404
    %v489 = vpack.c.b16 %v408, %v405
    %v490 = vpack.c.b16 %v409, %v406
    %v491 = vpack.c.b16 %v413, %v410
    %v492 = vpack.c.b16 %v414, %v411
    %v493 = vpack.c.b16 %v415, %v412
    %v494 = vpack.c.b16 %v419, %v416
    %v495 = vpack.c.b16 %v420, %v417
    %v496 = vpack.c.b16 %v421, %v418
    %v497 = vpack.c.b16 %v425, %v422
    %v498 = vpack.c.b16 %v426, %v423
    %v499 = vpack.c.b16 %v427, %v424
    %v500 = vpack.c.b16 %v431, %v428
    %v501 = vpack.c.b16 %v432, %v429
    %v502 = vpack.c.b16 %v433, %v430
    %v503 = vpack.c.b16 %v437, %v434
    %v504 = vpack.c.b16 %v438, %v435
    %v505 = vpack.c.b16 %v439, %v436
    %v506 = vpack.c.b16 %v443, %v440
    %v507 = vpack.c.b16 %v444, %v441
    %v508 = vpack.c.b16 %v445, %v442
    %v509 = vpack.c.b16 %v449, %v446
    %v510 = vpack.c.b16 %v450, %v447
    %v511 = vpack.c.b16 %v451, %v448
    %v512 = vpack.c.b16 %v455, %v452
    %v513 = vpack.c.b16 %v456, %v453
    %v514 = vpack.c.b16 %v457, %v454
    %v515 = vpack.c.b16 %v461, %v458
    %v516 = vpack.c.b16 %v462, %v459
    %v517 = vpack.c.b16 %v463, %v460
    %v518 = vpack.c.b16 %v467, %v464
    %v519 = vpack.c.b16 %v468, %v465
    %v520 = vpack.c.b16 %v469, %v466
    %v521 = vpack.c.b16 %v473, %v470
    %v522 = vpack.c.b16 %v474, %v471
    %v523 = vpack.c.b16 %v475, %v472
    %v524 = vpack.c.b16 %v479, %v476
    %v525 = vpack.c.b16 %v480, %v477
    %v526 = vpack.c.b16 %v481, %v478
    %v527 = vpack.c.b16 %v485, %v482
    %v528 = vpack.c.b16 %v486, %v483
    %v529 = vpack.c.b16 %v487, %v484
    %v572 = vsel %vm275, %v289, 0
    %v574 = vsel %vm275, %v291, 0
    %576 = vmatprep.subr.bf16.mxu0 %v489
    %577 = vmatpush1.bf16.msra.mxu0 %v488
    %578 = vmatprep.subr.bf16.mxu0 %v492
    %579 = vmatpush1.bf16.msra.mxu0 %v491
    %580 = vmatprep.subr.bf16.mxu0 %v495
    %581 = vmatpush1.bf16.msra.mxu0 %v494
    %582 = vmatprep.subr.bf16.mxu0 %v498
    %583 = vmatpush1.bf16.msra.mxu0 %v497
    %584 = vmatprep.subr.bf16.mxu0 %v501
    %585 = vmatpush1.bf16.msra.mxu0 %v500
    %586 = vmatprep.subr.bf16.mxu0 %v504
    %587 = vmatpush1.bf16.msra.mxu0 %v503
    %588 = vmatprep.subr.bf16.mxu0 %v507
    %589 = vmatpush1.bf16.msra.mxu0 %v506
    %590 = vmatprep.subr.bf16.mxu0 %v510
    %591 = vmatpush1.bf16.msra.mxu0 %v509
    %592 = vmatprep.subr.bf16.mxu0 %v513
    %593 = vmatpush1.bf16.msra.mxu0 %v512
    %594 = vmatprep.subr.bf16.mxu0 %v516
    %595 = vmatpush1.bf16.msra.mxu0 %v515
    %596 = vmatprep.subr.bf16.mxu0 %v519
    %597 = vmatpush1.bf16.msra.mxu0 %v518
    %598 = vmatprep.subr.bf16.mxu0 %v522
    %599 = vmatpush1.bf16.msra.mxu0 %v521
    %600 = vmatprep.subr.bf16.mxu0 %v525
    %601 = vmatpush1.bf16.msra.mxu0 %v524
    %602 = vmatprep.subr.bf16.mxu0 %v528
    %603 = vmatpush1.bf16.msra.mxu0 %v527
    %604 = vmatprep.subr.bf16.mxu0 0
    %605 = vmatpush1.bf16.msra.mxu0 0
    %606 = vmatprep.subr.bf16.mxu0 0
    %607 = vmatpush1.bf16.msra.mxu0 0
    %608 = vmatprep.mubr.bf16.mxu0 %v572
    %609 = vmatmul.mubr.bf16.gmra.mrb[0].mxu0 %v277
    %v610 = vpop.f32.mrb[0].mxu0
    %v611 = vadd.f32 0.0, %v610
    %v612 = vpop.f32.mrb[0].mxu0
    %v613 = vadd.f32 0.0, %v612
    %v614 = vpop.f32.mrb[0].mxu0
    %v615 = vadd.f32 0.0, %v614
    %v616 = vpop.f32.mrb[0].mxu0
    %v617 = vadd.f32 0.0, %v616
    %618 = vmatprep.mubr.bf16.mxu0 %v574
    %619 = vmatmul.mubr.bf16.gmra.mrb[0].mxu0 %v280
    %v620 = vpop.f32.mrb[0].mxu0
    %v621 = vadd.f32 0.0, %v620
    %v622 = vpop.f32.mrb[0].mxu0
    %v623 = vadd.f32 0.0, %v622
    %v624 = vpop.f32.mrb[0].mxu0
    %v625 = vadd.f32 0.0, %v624
    %v626 = vpop.f32.mrb[0].mxu0
    %v627 = vadd.f32 0.0, %v626
    %628 = vdwg.mxu0
    %629 = vmatprep.subr.bf16.mxu0 0
    %630 = vmatpush1.bf16.msra.mxu0 %v490
    %631 = vmatprep.subr.bf16.mxu0 0
    %632 = vmatpush1.bf16.msra.mxu0 %v493
    %633 = vmatprep.subr.bf16.mxu0 0
    %634 = vmatpush1.bf16.msra.mxu0 %v496
    %635 = vmatprep.subr.bf16.mxu0 0
    %636 = vmatpush1.bf16.msra.mxu0 %v499
    %637 = vmatprep.subr.bf16.mxu0 0
    %638 = vmatpush1.bf16.msra.mxu0 %v502
    %639 = vmatprep.subr.bf16.mxu0 0
    %640 = vmatpush1.bf16.msra.mxu0 %v505
    %641 = vmatprep.subr.bf16.mxu0 0
    %642 = vmatpush1.bf16.msra.mxu0 %v508
    %643 = vmatprep.subr.bf16.mxu0 0
    %644 = vmatpush1.bf16.msra.mxu0 %v511
    %645 = vmatprep.subr.bf16.mxu0 0
    %646 = vmatpush1.bf16.msra.mxu0 %v514
    %647 = vmatprep.subr.bf16.mxu0 0
    %648 = vmatpush1.bf16.msra.mxu0 %v517
    %649 = vmatprep.subr.bf16.mxu0 0
    %650 = vmatpush1.bf16.msra.mxu0 %v520
    %651 = vmatprep.subr.bf16.mxu0 0
    %652 = vmatpush1.bf16.msra.mxu0 %v523
    %653 = vmatprep.subr.bf16.mxu0 0
    %654 = vmatpush1.bf16.msra.mxu0 %v526
    %655 = vmatprep.subr.bf16.mxu0 0
    %656 = vmatpush1.bf16.msra.mxu0 %v529
    %657 = vmatprep.subr.bf16.mxu0 0
    %658 = vmatpush1.bf16.msra.mxu0 0
    %659 = vmatprep.subr.bf16.mxu0 0
    %660 = vmatpush1.bf16.msra.mxu0 0
    %661 = vmatprep.mubr.bf16.mxu0 %v572
    %662 = vmatmul.mubr.bf16.gmra.mrb[0].mxu0 %v277
    %v663 = vpop.f32.mrb[0].mxu0
    %v664 = vadd.f32 0.0, %v663
    %v665 = vpop.f32.mrb[0].mxu0
    %v666 = vpop.f32.mrb[0].mxu0
    %v667 = vadd.f32 0.0, %v666
    %v668 = vpop.f32.mrb[0].mxu0
    %669 = vmatprep.mubr.bf16.mxu0 %v574
    %670 = vmatmul.mubr.bf16.gmra.mrb[0].mxu0 %v280
    %v671 = vpop.f32.mrb[0].mxu0
    %v672 = vadd.f32 0.0, %v671
    %v673 = vpop.f32.mrb[0].mxu0
    %v674 = vpop.f32.mrb[0].mxu0
    %v675 = vadd.f32 0.0, %v674
    %v676 = vpop.f32.mrb[0].mxu0
    %677 = vdwg.mxu0
    %v678 = vlaneseq
    %v679 = vshrl.u32 %v678, 7
    %v680 = vadd.s32 %v679, 8
    %v681 = vlaneseq
    %v682 = vshrl.u32 %v681, 7
    %v683 = vsub.s32 0, %v682
    %v684 = vrot.slane %v66, %v683
    %v685 = vlaneseq
    %v686 = vshrl.u32 %v685, 7
    %v687 = vsub.s32 1, %v686
    %v688 = vrot.slane %v66, %v687
    %v689 = vlaneseq
    %v690 = vshrl.u32 %v689, 7
    %v691 = vsub.s32 2, %v690
    %v692 = vrot.slane %v66, %v691
    %vm693 = vcmp.lt.s32.totalorder %v679, %v684
    %vm694 = vcmp.lt.s32.totalorder %v679, %v688
    %vm695 = vcmp.lt.s32.totalorder %v679, %v692
    %vm696 = vcmp.lt.s32.totalorder %v680, %v684
    %vm697 = vcmp.lt.s32.totalorder %v680, %v688
    %vm698 = vcmp.lt.s32.totalorder %v680, %v692
    %v699 = vsel %vm693, 1, 0
    %v700 = vsel %vm694, 1, 0
    %v701 = vsel %vm695, 1, 0
    %v702 = vsel %vm696, 1, 0
    %v703 = vsel %vm697, 1, 0
    %v704 = vsel %vm698, 1, 0
    %vm705 = vcmp.eq.s32.totalorder %v699, 1
    %vm706 = vcmp.eq.s32.totalorder %v700, 1
    %vm707 = vcmp.eq.s32.totalorder %v701, 1
    %vm708 = vcmp.eq.s32.totalorder %v702, 1
    %vm709 = vcmp.eq.s32.totalorder %v703, 1
    %vm710 = vcmp.eq.s32.totalorder %v704, 1
    %v711 = vsel %vm705, %v611, -3.4028235e+38
    %v712 = vsel %vm706, %v613, -3.4028235e+38
    %v713 = vsel %vm707, %v664, -3.4028235e+38
    %v714 = vsel %vm708, %v615, -3.4028235e+38
    %v715 = vsel %vm709, %v617, -3.4028235e+38
    %v716 = vsel %vm710, %v667, -3.4028235e+38
    %v717 = vsel %vm705, %v621, -3.4028235e+38
    %v718 = vsel %vm706, %v623, -3.4028235e+38
    %v719 = vsel %vm707, %v672, -3.4028235e+38
    %v720 = vsel %vm708, %v625, -3.4028235e+38
    %v721 = vsel %vm709, %v627, -3.4028235e+38
    %v722 = vsel %vm710, %v675, -3.4028235e+38
    %v723 = vmax.f32 %v711, %v714
    %v724 = vrot.slane %v723, 4
    %v725 = vmax.f32 %v723, %v724
    %v726 = vrot.slane %v725, 2
    %v727 = vmax.f32 %v725, %v726
    %v728 = vrot.slane %v727, 1
    %v729 = vmax.f32 %v727, %v728
    %v730 = vmax.f32 %v712, %v715
    %v731 = vrot.slane %v730, 4
    %v732 = vmax.f32 %v730, %v731
    %v733 = vrot.slane %v732, 2
    %v734 = vmax.f32 %v732, %v733
    %v735 = vrot.slane %v734, 1
    %v736 = vmax.f32 %v734, %v735
    %v737 = vmax.f32 %v713, %v716
    %v738 = vrot.slane %v737, 4
    %v739 = vmax.f32 %v737, %v738
    %v740 = vrot.slane %v739, 2
    %v741 = vmax.f32 %v739, %v740
    %v742 = vrot.slane %v741, 1
    %v743 = vmax.f32 %v741, %v742
    %v744 = vmax.f32 %v717, %v720
    %v745 = vrot.slane %v744, 4
    %v746 = vmax.f32 %v744, %v745
    %v747 = vrot.slane %v746, 2
    %v748 = vmax.f32 %v746, %v747
    %v749 = vrot.slane %v748, 1
    %v750 = vmax.f32 %v748, %v749
    %v751 = vmax.f32 %v718, %v721
    %v752 = vrot.slane %v751, 4
    %v753 = vmax.f32 %v751, %v752
    %v754 = vrot.slane %v753, 2
    %v755 = vmax.f32 %v753, %v754
    %v756 = vrot.slane %v755, 1
    %v757 = vmax.f32 %v755, %v756
    %v758 = vmax.f32 %v719, %v722
    %v759 = vrot.slane %v758, 4
    %v760 = vmax.f32 %v758, %v759
    %v761 = vrot.slane %v760, 2
    %v762 = vmax.f32 %v760, %v761
    %v763 = vrot.slane %v762, 1
    %v764 = vmax.f32 %v762, %v763
    %v771 = vcombine.low %v729, %v736
    %v773 = vunpack.c.l.s4 1983009808
    %v774 = vunpack.c.0.s8 %v773
    %v775 = vlaneseq
    %v776 = vshrl.u32 %v775, 7
    %v777 = vsub.s32 %v774, %v776
    %v778 = vrot.slane %v771, %v777
    %v780 = vunpack.c.l.s4 1983009808
    %v781 = vunpack.c.0.s8 %v780
    %v782 = vlaneseq
    %v783 = vshrl.u32 %v782, 7
    %v784 = vsub.s32 %v781, %v783
    %v785 = vrot.slane %v743, %v784
    %v786 = vcombine.low %v778, %v785
    %v787 = vcombine.low %v750, %v757
    %v789 = vunpack.c.l.s4 1983009808
    %v790 = vunpack.c.0.s8 %v789
    %v791 = vlaneseq
    %v792 = vshrl.u32 %v791, 7
    %v793 = vsub.s32 %v790, %v792
    %v794 = vrot.slane %v787, %v793
    %v796 = vunpack.c.l.s4 1983009808
    %v797 = vunpack.c.0.s8 %v796
    %v798 = vlaneseq
    %v799 = vshrl.u32 %v798, 7
    %v800 = vsub.s32 %v797, %v799
    %v801 = vrot.slane %v764, %v800
    %v802 = vcombine.low %v794, %v801
    %vm803 = vcmask 1044484
    %v804 = vsel %vm803, %v786, %v786
    %vm805 = vcmask 1046534
    %v806 = vsel %vm805, %v786, %v804
    %v807 = vrot.slane %v802, 7
    %vm808 = vcmask 1041409
    %v809 = vsel %vm808, %v807, %v806
    %vm810 = vcmask 1043459
    %v811 = vsel %vm810, %v807, %v809
    %vm812 = vcmask 1045509
    %v813 = vsel %vm812, %v807, %v811
    %vm814 = vcmask 1047559
    %v815 = vsel %vm814, %v807, %v813
    %817 = vst [vmem:[#allocation2] sm:$0x3f] %v815
    %v818 = vld [vmem:[#allocation2] sm:$0x3f]
    %v819 = vld [vmem:[%s3] sm:$0x7]
    %v821 = vlaneseq
    %v822 = vshrl.u32 %v821, 7
    %v823 = vsub.s32 0, %v822
    %v824 = vrot.slane %v819, %v823
    %v825 = vlaneseq
    %v826 = vshrl.u32 %v825, 7
    %v827 = vsub.s32 1, %v826
    %v828 = vrot.slane %v819, %v827
    %v829 = vlaneseq
    %v830 = vshrl.u32 %v829, 7
    %v831 = vsub.s32 2, %v830
    %v832 = vrot.slane %v819, %v831
    %v833 = vcombine.low %v824, %v828
    %v835 = vunpack.c.l.s4 1983009808
    %v836 = vunpack.c.0.s8 %v835
    %v837 = vlaneseq
    %v838 = vshrl.u32 %v837, 7
    %v839 = vsub.s32 %v836, %v838
    %v840 = vrot.slane %v833, %v839
    %v842 = vunpack.c.l.s4 1983009808
    %v843 = vunpack.c.0.s8 %v842
    %v844 = vlaneseq
    %v845 = vshrl.u32 %v844, 7
    %v846 = vsub.s32 %v843, %v845
    %v847 = vrot.slane %v832, %v846
    %v848 = vcombine.low %v840, %v847
    %v850 = vadd.f32 %v818, %v848
    %v852 = vcombine.high %v850, %v850
    %v854 = vunpack.c.l.s4 1983009808
    %v855 = vunpack.c.0.s8 %v854
    %v856 = vlaneseq
    %v857 = vshrl.u32 %v856, 7
    %v858 = vsub.s32 %v855, %v857
    %v859 = vrot.slane %v850, %v858
    %v861 = vunpack.c.l.s4 1983009808
    %v862 = vunpack.c.0.s8 %v861
    %v863 = vlaneseq
    %v864 = vshrl.u32 %v863, 7
    %v865 = vsub.s32 %v862, %v864
    %v866 = vrot.slane %v852, %v865
    %v867 = vcombine.high %v859, %v859
    %v871 = vpack.c.bf16 %v859, %v859
    %v872 = vpack.c.bf16 %v867, %v867
    %v873 = vpack.c.bf16 %v866, %v866
    %v874 = vld [vmem:[#allocation8] sm:$0xf]
    %v875 = vld [vmem:[#allocation8 + $0x4] sm:$0xf]
    %v876 = vld [vmem:[#allocation8 + $0x8] sm:$0xf]
    %v877 = vld [vmem:[#allocation8 + $0xc] sm:$0xf]
    %v878 = vld [vmem:[#allocation8 + $0x10] sm:$0xf]
    %v879 = vld [vmem:[#allocation8 + $0x14] sm:$0xf]
    %v880 = vld [vmem:[#allocation8 + $0x18] sm:$0xf]
    %v881 = vld [vmem:[#allocation8 + $0x1c] sm:$0xf]
    %v882 = vld [vmem:[#allocation8 + $0x20] sm:$0xf]
    %v883 = vld [vmem:[#allocation8 + $0x24] sm:$0xf]
    %v884 = vld [vmem:[#allocation8 + $0x28] sm:$0xf]
    %v885 = vld [vmem:[#allocation8 + $0x2c] sm:$0xf]
    %v886 = vld [vmem:[#allocation8 + $0x30] sm:$0xf]
    %v887 = vld [vmem:[#allocation8 + $0x34] sm:$0xf]
    %v888 = vld [vmem:[#allocation8 + $0x38] sm:$0xf]
    %v889 = vld [vmem:[#allocation8 + $0x3c] sm:$0xf]
    %v890 = vld [vmem:[#allocation8 + $0x40] sm:$0xf]
    %v891 = vld [vmem:[#allocation8 + $0x44] sm:$0xf]
    %v892 = vld [vmem:[#allocation8 + $0x48] sm:$0xf]
    %v893 = vld [vmem:[#allocation8 + $0x4c] sm:$0xf]
    %v894 = vld [vmem:[#allocation8 + $0x50] sm:$0xf]
    %v895 = vld [vmem:[#allocation8 + $0x54] sm:$0xf]
    %v896 = vld [vmem:[#allocation8 + $0x58] sm:$0xf]
    %v897 = vld [vmem:[#allocation8 + $0x5c] sm:$0xf]
    %v898 = vld [vmem:[#allocation8 + $0x60] sm:$0xf]
    %v899 = vld [vmem:[#allocation8 + $0x64] sm:$0xf]
    %v900 = vld [vmem:[#allocation8 + $0x68] sm:$0xf]
    %v901 = vld [vmem:[#allocation8 + $0x6c] sm:$0xf]
    %v902 = vld [vmem:[#allocation8 + $0x70] sm:$0xf]
    %v903 = vld [vmem:[#allocation8 + $0x74] sm:$0xf]
    %v904 = vld [vmem:[#allocation8 + $0x78] sm:$0xf]
    %v905 = vld [vmem:[#allocation8 + $0x7c] sm:$0xf]
    %v906 = vld [vmem:[#allocation8 + $0x80] sm:$0xf]
    %v907 = vld [vmem:[#allocation8 + $0x84] sm:$0xf]
    %v908 = vld [vmem:[#allocation8 + $0x88] sm:$0xf]
    %v909 = vld [vmem:[#allocation8 + $0x8c] sm:$0xf]
    %v910 = vld [vmem:[#allocation8 + $0x90] sm:$0xf]
    %v911 = vld [vmem:[#allocation8 + $0x94] sm:$0xf]
    %v912 = vld [vmem:[#allocation8 + $0x98] sm:$0xf]
    %v913 = vld [vmem:[#allocation8 + $0x9c] sm:$0xf]
    %v914 = vld [vmem:[#allocation8 + $0xa0] sm:$0xf]
    %v915 = vld [vmem:[#allocation8 + $0xa4] sm:$0xf]
    %v916 = vld [vmem:[#allocation8 + $0xa8] sm:$0xf]
    %v917 = vld [vmem:[#allocation8 + $0xac] sm:$0xf]
    %v918 = vld [vmem:[#allocation8 + $0xb0] sm:$0xf]
    %v919 = vld [vmem:[#allocation8 + $0xb4] sm:$0xf]
    %v920 = vld [vmem:[#allocation8 + $0xb8] sm:$0xf]
    %v921 = vld [vmem:[#allocation8 + $0xbc] sm:$0xf]
    %v922 = vld [vmem:[%s5] sm:$0x1]
    %v924 = vlaneseq
    %v925 = vshrl.u32 %v924, 7
    %v926 = vsub.s32 0, %v925
    %v927 = vrot.slane %v922, %v926
    %v977 = vunpack.c.l.b16 %v874
    %v978 = vunpack.c.l.b16 %v875
    %v979 = vunpack.c.l.b16 %v876
    %v980 = vunpack.c.l.b16 %v877
    %v981 = vunpack.c.l.b16 %v878
    %v982 = vunpack.c.l.b16 %v879
    %v983 = vunpack.c.l.b16 %v880
    %v984 = vunpack.c.l.b16 %v881
    %v985 = vunpack.c.l.b16 %v882
    %v986 = vunpack.c.l.b16 %v883
    %v987 = vunpack.c.l.b16 %v884
    %v988 = vunpack.c.l.b16 %v885
    %v989 = vunpack.c.l.b16 %v886
    %v990 = vunpack.c.l.b16 %v887
    %v991 = vunpack.c.l.b16 %v888
    %v992 = vunpack.c.l.b16 %v889
    %v993 = vunpack.c.l.b16 %v890
    %v994 = vunpack.c.l.b16 %v891
    %v995 = vunpack.c.l.b16 %v892
    %v996 = vunpack.c.l.b16 %v893
    %v997 = vunpack.c.l.b16 %v894
    %v998 = vunpack.c.l.b16 %v895
    %v999 = vunpack.c.l.b16 %v896
    %v1000 = vunpack.c.l.b16 %v897
    %v1001 = vunpack.c.l.b16 %v898
    %v1002 = vunpack.c.l.b16 %v899
    %v1003 = vunpack.c.l.b16 %v900
    %v1004 = vunpack.c.l.b16 %v901
    %v1005 = vunpack.c.l.b16 %v902
    %v1006 = vunpack.c.l.b16 %v903
    %v1007 = vunpack.c.l.b16 %v904
    %v1008 = vunpack.c.l.b16 %v905
    %v1009 = vunpack.c.l.b16 %v906
    %v1010 = vunpack.c.l.b16 %v907
    %v1011 = vunpack.c.l.b16 %v908
    %v1012 = vunpack.c.l.b16 %v909
    %v1013 = vunpack.c.l.b16 %v910
    %v1014 = vunpack.c.l.b16 %v911
    %v1015 = vunpack.c.l.b16 %v912
    %v1016 = vunpack.c.l.b16 %v913
    %v1017 = vunpack.c.l.b16 %v914
    %v1018 = vunpack.c.l.b16 %v915
    %v1019 = vunpack.c.l.b16 %v916
    %v1020 = vunpack.c.l.b16 %v917
    %v1021 = vunpack.c.l.b16 %v918
    %v1022 = vunpack.c.l.b16 %v919
    %v1023 = vunpack.c.l.b16 %v920
    %v1024 = vunpack.c.l.b16 %v921
    %v1025 = vpack.c.b16 %v978, %v977
    %v1026 = vpack.c.b16 %v980, %v979
    %v1027 = vpack.c.b16 %v982, %v981
    %v1028 = vpack.c.b16 %v984, %v983
    %v1029 = vpack.c.b16 %v986, %v985
    %v1030 = vpack.c.b16 %v988, %v987
    %v1031 = vpack.c.b16 %v990, %v989
    %v1032 = vpack.c.b16 %v992, %v991
    %v1033 = vpack.c.b16 %v994, %v993
    %v1034 = vpack.c.b16 %v996, %v995
    %v1035 = vpack.c.b16 %v998, %v997
    %v1036 = vpack.c.b16 %v1000, %v999
    %v1037 = vpack.c.b16 %v1002, %v1001
    %v1038 = vpack.c.b16 %v1004, %v1003
    %v1039 = vpack.c.b16 %v1006, %v1005
    %v1040 = vpack.c.b16 %v1008, %v1007
    %v1041 = vpack.c.b16 %v1010, %v1009
    %v1042 = vpack.c.b16 %v1012, %v1011
    %v1043 = vpack.c.b16 %v1014, %v1013
    %v1044 = vpack.c.b16 %v1016, %v1015
    %v1045 = vpack.c.b16 %v1018, %v1017
    %v1046 = vpack.c.b16 %v1020, %v1019
    %v1047 = vpack.c.b16 %v1022, %v1021
    %v1048 = vpack.c.b16 %v1024, %v1023
    %1073 = vmatprep.subr.bf16.mxu0 0
    %1074 = vmatpush1.bf16.msra.mxu0 %v1025
    %1075 = vmatprep.subr.bf16.mxu0 0
    %1076 = vmatpush1.bf16.msra.mxu0 %v1026
    %1077 = vmatprep.subr.bf16.mxu0 0
    %1078 = vmatpush1.bf16.msra.mxu0 %v1027
    %1079 = vmatprep.subr.bf16.mxu0 0
    %1080 = vmatpush1.bf16.msra.mxu0 %v1028
    %1081 = vmatprep.subr.bf16.mxu0 0
    %1082 = vmatpush1.bf16.msra.mxu0 %v1029
    %1083 = vmatprep.subr.bf16.mxu0 0
    %1084 = vmatpush1.bf16.msra.mxu0 %v1030
    %1085 = vmatprep.subr.bf16.mxu0 0
    %1086 = vmatpush1.bf16.msra.mxu0 %v1031
    %1087 = vmatprep.subr.bf16.mxu0 0
    %1088 = vmatpush1.bf16.msra.mxu0 %v1032
    %1089 = vmatprep.subr.bf16.mxu0 0
    %1090 = vmatpush1.bf16.msra.mxu0 %v1033
    %1091 = vmatprep.subr.bf16.mxu0 0
    %1092 = vmatpush1.bf16.msra.mxu0 %v1034
    %1093 = vmatprep.subr.bf16.mxu0 0
    %1094 = vmatpush1.bf16.msra.mxu0 %v1035
    %1095 = vmatprep.subr.bf16.mxu0 0
    %1096 = vmatpush1.bf16.msra.mxu0 %v1036
    %1097 = vmatprep.subr.bf16.mxu0 0
    %1098 = vmatpush1.bf16.msra.mxu0 %v1037
    %1099 = vmatprep.subr.bf16.mxu0 0
    %1100 = vmatpush1.bf16.msra.mxu0 %v1038
    %1101 = vmatprep.subr.bf16.mxu0 0
    %1102 = vmatpush1.bf16.msra.mxu0 %v1039
    %1103 = vmatprep.subr.bf16.mxu0 0
    %1104 = vmatpush1.bf16.msra.mxu0 %v1040
    %1105 = vmatprep.mubr.bf16.mxu0 %v872
    %1106 = vmatmul.mubr.bf16.gmra.mrb[0].mxu0 %v871
    %v1107 = vpop.f32.mrb[0].mxu0
    %v1108 = vadd.f32 %v927, %v1107
    %v1109 = vpop.f32.mrb[0].mxu0
    %v1110 = vpop.f32.mrb[0].mxu0
    %v1111 = vpop.f32.mrb[0].mxu0
    %1112 = vdwg.mxu0
    %1113 = vmatprep.subr.bf16.mxu0 0
    %1114 = vmatpush1.bf16.msra.mxu0 %v1041
    %1115 = vmatprep.subr.bf16.mxu0 0
    %1116 = vmatpush1.bf16.msra.mxu0 %v1042
    %1117 = vmatprep.subr.bf16.mxu0 0
    %1118 = vmatpush1.bf16.msra.mxu0 %v1043
    %1119 = vmatprep.subr.bf16.mxu0 0
    %1120 = vmatpush1.bf16.msra.mxu0 %v1044
    %1121 = vmatprep.subr.bf16.mxu0 0
    %1122 = vmatpush1.bf16.msra.mxu0 %v1045
    %1123 = vmatprep.subr.bf16.mxu0 0
    %1124 = vmatpush1.bf16.msra.mxu0 %v1046
    %1125 = vmatprep.subr.bf16.mxu0 0
    %1126 = vmatpush1.bf16.msra.mxu0 %v1047
    %1127 = vmatprep.subr.bf16.mxu0 0
    %1128 = vmatpush1.bf16.msra.mxu0 %v1048
    %1129 = vmatprep.subr.bf16.mxu0 0
    %1130 = vmatpush1.bf16.msra.mxu0 0
    %1131 = vmatprep.subr.bf16.mxu0 0
    %1132 = vmatpush1.bf16.msra.mxu0 0
    %1133 = vmatprep.subr.bf16.mxu0 0
    %1134 = vmatpush1.bf16.msra.mxu0 0
    %1135 = vmatprep.subr.bf16.mxu0 0
    %1136 = vmatpush1.bf16.msra.mxu0 0
    %1137 = vmatprep.subr.bf16.mxu0 0
    %1138 = vmatpush1.bf16.msra.mxu0 0
    %1139 = vmatprep.subr.bf16.mxu0 0
    %1140 = vmatpush1.bf16.msra.mxu0 0
    %1141 = vmatprep.subr.bf16.mxu0 0
    %1142 = vmatpush1.bf16.msra.mxu0 0
    %1143 = vmatprep.subr.bf16.mxu0 0
    %1144 = vmatpush1.bf16.msra.mxu0 0
    %1145 = vmatprep.mubr.bf16.mxu0 0
    %1146 = vmatmul.mubr.bf16.gmra.mrb[0].mxu0 %v873
    %v1147 = vpop.f32.mrb[0].mxu0
    %v1148 = vadd.f32 %v1108, %v1147
    %v1149 = vpop.f32.mrb[0].mxu0
    %v1150 = vpop.f32.mrb[0].mxu0
    %v1151 = vpop.f32.mrb[0].mxu0
    %1152 = vdwg.mxu0
    %1153 = vst [vmem:[#allocation9] sm:$0x3] %v1148
    // Predicated region
    $region38: #{tpu_custom_call.1} parent=1 // pred_check
      _
    $region39: #{tpu_custom_call.1} parent=1 // pred_check_branch
      %1155 = sbr.rel (0) target = $region41
    $region40: #{tpu_custom_call.1} parent=1 // pred_region
      %s1157 = ssub.s32 32, 32
      %1158 = vsyncadd [#allocation5], %s1157
      %s1160 = sshll.u32 [#allocation9], 4
      %s1161 = int_to_ptr.vmem [resolvable:$true] %s1160
      %1163 = dma.vmem_to_hbm [thread:$0]  %s1161, 32, %s6, [#allocation5]
    $region41: #{tpu_custom_call.1} parent=1 // pred_fallthru
      _
    // Predicated region
    $region42: #{tpu_custom_call.1} parent=1 // pred_check
      _
    $region43: #{tpu_custom_call.1} parent=1 // pred_check_branch
      %1165 = sbr.rel (0) target = $region45
    $region44: #{tpu_custom_call.1} parent=1 // pred_region
      %1166 = dma.done [#allocation5], 32
    $region45: #{tpu_custom_call.1} parent=1 // pred_fallthru
      _
    %1167 = vsyncpa [#allocation4], 1
    %1168 = vsyncpa [#allocation7], 1
    %1169 = vsyncpa [#allocation5], 1

</llo_original>
